<compile_context>
chip_gen: v7x
topology: tpu7x:2x2x1
jax: 0.10.0
libtpu: 0.0.40
codegen_flags: <defaults>
</compile_context>

<pallas_src>
import functools

import jax
import jax.numpy as jnp
from jax.experimental import pallas as pl
from jax.experimental.pallas import tpu as pltpu


def _round_up(v, m):
    return ((v + m - 1) // m) * m


def _dw_sep_conv_kernel(x_ref, wdw_ref, wpw_ref, bias_ref, o_ref, *, kernel_size):
    # x_ref:    (1, L, C)   one batch element; time on sublanes, channels on lanes
    # wdw_ref:  (K, C)      depthwise taps, one lane-dense row per tap
    # wpw_ref:  (C, O)      pointwise weight, pre-transposed (in_dim, out_dim)
    # bias_ref: (1, O)      pointwise bias
    # o_ref:    (1, L, O)
    pad = kernel_size // 2
    x = x_ref[0, :, :]                                 # (L, C), f32
    L = x.shape[0]

    # ---- depthwise conv along time: XLU roll + boundary select + FMA -------
    row = jax.lax.broadcasted_iota(jnp.int32, (L, 1), 0)
    acc = x * wdw_ref[pad:pad + 1, :]                  # center tap
    for k in range(kernel_size):                       # K is tiny & static
        off = k - pad
        if off == 0:
            continue
        # shifted[l] = x[l + off] (circular); boundary rows masked to zero,
        # which reproduces Conv1d's zero padding.
        shifted = pltpu.roll(x, shift=(-off) % L, axis=0)
        if off > 0:
            valid = row < (L - off)
        else:
            valid = row >= (-off)
        acc = acc + jnp.where(valid, shifted, 0.0) * wdw_ref[k:k + 1, :]

    # ---- pointwise (1x1) conv = matmul over channels + bias -----------------
    z = jnp.dot(acc, wpw_ref[...], preferred_element_type=jnp.float32)
    z = z + bias_ref[...]                              # (1, O) broadcast
    o_ref[0, :, :] = z.astype(o_ref.dtype)


def depthwise_separable_conv(x, w_dw, w_pw, b_pw, *, kernel_size):
    """Forward pass of the PyTorch DepthwiseSeparableConvolution module.

    x:    (B, L, C_in)   input (same layout the module's forward receives)
    w_dw: (C_in, K)      depthwise_conv.weight.squeeze(1)
    w_pw: (C_out, C_in)  pointwise_conv.weight.squeeze(-1)
    b_pw: (C_out,)       pointwise_conv.bias
    returns: (B, L, C_out)
    """
    B, L, C_in = x.shape
    C_out = w_pw.shape[0]
    K = kernel_size
    assert K % 2 == 1, "padding=K//2 only preserves length for odd kernel_size"
    assert w_dw.shape == (C_in, K)
    assert w_pw.shape == (C_out, C_in)
    assert b_pw.shape == (C_out,)

    # Lane-dense layout: channels -> multiples of 128, time -> multiple of 8.
    C_pad = _round_up(C_in, 128)
    O_pad = _round_up(C_out, 128)
    L_pad = _round_up(L, 8)

    x_p = jnp.zeros((B, L_pad, C_pad), jnp.float32).at[:, :L, :C_in].set(
        x.astype(jnp.float32))
    wdw_p = jnp.zeros((K, C_pad), jnp.float32).at[:, :C_in].set(
        jnp.asarray(w_dw, jnp.float32).T)
    wpw_p = jnp.zeros((C_pad, O_pad), jnp.float32).at[:C_in, :C_out].set(
        jnp.asarray(w_pw, jnp.float32).T)
    b_p = jnp.zeros((1, O_pad), jnp.float32).at[0, :C_out].set(
        jnp.asarray(b_pw, jnp.float32))

    kernel = functools.partial(_dw_sep_conv_kernel, kernel_size=K)

    # TODO(synk): for very long sequences, tile the time axis with halo rows
    # instead of one full-L block per batch element (bound VMEM on v7x).
    out = pl.pallas_call(
        kernel,
        out_shape=jax.ShapeDtypeStruct((B, L_pad, O_pad), jnp.float32),
        grid_spec=pltpu.PrefetchScalarGridSpec(
            num_scalar_prefetch=0,
            grid=(B,),
            in_specs=[
                pl.BlockSpec((1, L_pad, C_pad), lambda b: (b, 0, 0)),
                pl.BlockSpec((K, C_pad), lambda b: (0, 0)),
                pl.BlockSpec((C_pad, O_pad), lambda b: (0, 0)),
                pl.BlockSpec((1, O_pad), lambda b: (0, 0)),
            ],
            out_specs=pl.BlockSpec((1, L_pad, O_pad), lambda b: (b, 0, 0)),
        ),
        compiler_params=pltpu.CompilerParams(
            dimension_semantics=("parallel",),
        ),
    )(x_p, wdw_p, wpw_p, b_p)

    return out[:, :L, :C_out]


def depthwise_separable_conv_reference(x, w_dw, w_pw, b_pw, *, kernel_size):
    """Plain-JAX replica of the PyTorch forward for verification."""
    B, L, C = x.shape
    K = kernel_size
    pad = K // 2
    xp = jnp.pad(x, ((0, 0), (pad, pad), (0, 0)))
    y = jnp.zeros((B, L, C), x.dtype)
    for k in range(K):
        y = y + xp[:, k:k + L, :] * w_dw[:, k]
    z = jnp.einsum('blc,oc->blo', y, w_pw) + b_pw
    return z


if __name__ == "__main__":
    # Small shapes consistent with the module: batch=2, seq=16,
    # in_channels=8, out_channels=32, kernel_size=3.
    B, L = 2, 16
    C_IN, C_OUT, K = 8, 32, 3

    key = jax.random.PRNGKey(0)
    kx, kdw, kpw, kb = jax.random.split(key, 4)
    x = jax.random.normal(kx, (B, L, C_IN), dtype=jnp.float32)
    w_dw = jax.random.uniform(kdw, (C_IN, K), jnp.float32,
                              minval=-1.0, maxval=1.0) / jnp.sqrt(1.0 * K)
    w_pw = jax.random.uniform(kpw, (C_OUT, C_IN), jnp.float32,
                              minval=-1.0, maxval=1.0) / jnp.sqrt(1.0 * C_IN)
    b_pw = jax.random.uniform(kb, (C_OUT,), jnp.float32,
                              minval=-0.1, maxval=0.1)

    out = depthwise_separable_conv(x, w_dw, w_pw, b_pw, kernel_size=K)
    out = jax.block_until_ready(out)

    ref = depthwise_separable_conv_reference(x, w_dw, w_pw, b_pw, kernel_size=K)
    assert out.shape == (B, L, C_OUT)
    max_err = jnp.max(jnp.abs(out - ref))
    assert jnp.allclose(out, ref, rtol=1e-4, atol=1e-4), f"max abs err {max_err}"
    print("KERNEL_OK")
</pallas_src>

<mosaic_0001>
module attributes {stable_mosaic.version = 11 : i64} {
  func.func @_dw_sep_conv_kernel(%arg0: i32, %arg1: memref<1x16x128xf32, #tpu.memory_space<vmem>>, %arg2: memref<3x128xf32, #tpu.memory_space<vmem>>, %arg3: memref<128x128xf32, #tpu.memory_space<vmem>>, %arg4: memref<1x128xf32, #tpu.memory_space<vmem>>, %arg5: memref<1x16x128xf32, #tpu.memory_space<vmem>>) attributes {dimension_semantics = [#tpu.dimension_semantics<parallel>], iteration_bounds = array<i64: 2>, scalar_prefetch = 0 : i64, scratch_operands = 0 : i64, tpu.core_type = #tpu.core_type<tc>, window_params = [{transform_indices = @transform_0, window_bounds = array<i64: 1, 16, 128>}, {pipeline_mode = #tpu.pipeline_mode<synchronous>, transform_indices = @transform_1, window_bounds = array<i64: 3, 128>}, {pipeline_mode = #tpu.pipeline_mode<synchronous>, transform_indices = @transform_2, window_bounds = array<i64: 128, 128>}, {pipeline_mode = #tpu.pipeline_mode<synchronous>, transform_indices = @transform_3, window_bounds = array<i64: 1, 128>}, {transform_indices = @transform_4, window_bounds = array<i64: 1, 16, 128>}]} {
    %c0 = arith.constant 0 : index
    %c0_0 = arith.constant 0 : index
    %c0_1 = arith.constant 0 : index
    %0 = vector.load %arg1[%c0, %c0_0, %c0_1] : memref<1x16x128xf32, #tpu.memory_space<vmem>>, vector<1x16x128xf32>
    %1 = vector.shape_cast %0 : vector<1x16x128xf32> to vector<16x128xf32>
    %2 = tpu.iota {dimensions = array<i32: 0>} : vector<16x1xi32>
    %c1 = arith.constant 1 : index
    %c0_2 = arith.constant 0 : index
    %3 = vector.load %arg2[%c1, %c0_2] : memref<3x128xf32, #tpu.memory_space<vmem>>, vector<1x128xf32>
    %4 = vector.broadcast %3 : vector<1x128xf32> to vector<16x128xf32>
    %5 = arith.mulf %1, %4 : vector<16x128xf32>
    %c1_i32 = arith.constant 1 : i32
    %6 = tpu.dynamic_rotate %1 by %c1_i32 dim 0 : vector<16x128xf32>, i32 -> vector<16x128xf32>
    %c1_i32_3 = arith.constant 1 : i32
    %7 = vector.broadcast %c1_i32_3 : i32 to vector<16x1xi32>
    %8 = arith.cmpi sge, %2, %7 : vector<16x1xi32>
    %cst = arith.constant 0.000000e+00 : f32
    %9 = vector.shape_cast %8 : vector<16x1xi1> to vector<16x1xi1>
    %10 = vector.broadcast %9 : vector<16x1xi1> to vector<16x128xi1>
    %11 = vector.broadcast %cst : f32 to vector<16x128xf32>
    %12 = arith.select %10, %6, %11 : vector<16x128xi1>, vector<16x128xf32>
    %c0_4 = arith.constant 0 : index
    %c0_5 = arith.constant 0 : index
    %13 = vector.load %arg2[%c0_4, %c0_5] : memref<3x128xf32, #tpu.memory_space<vmem>>, vector<1x128xf32>
    %14 = vector.broadcast %13 : vector<1x128xf32> to vector<16x128xf32>
    %15 = arith.mulf %12, %14 : vector<16x128xf32>
    %16 = arith.addf %5, %15 : vector<16x128xf32>
    %c15_i32 = arith.constant 15 : i32
    %17 = tpu.dynamic_rotate %1 by %c15_i32 dim 0 : vector<16x128xf32>, i32 -> vector<16x128xf32>
    %c15_i32_6 = arith.constant 15 : i32
    %18 = vector.broadcast %c15_i32_6 : i32 to vector<16x1xi32>
    %19 = arith.cmpi slt, %2, %18 : vector<16x1xi32>
    %cst_7 = arith.constant 0.000000e+00 : f32
    %20 = vector.shape_cast %19 : vector<16x1xi1> to vector<16x1xi1>
    %21 = vector.broadcast %20 : vector<16x1xi1> to vector<16x128xi1>
    %22 = vector.broadcast %cst_7 : f32 to vector<16x128xf32>
    %23 = arith.select %21, %17, %22 : vector<16x128xi1>, vector<16x128xf32>
    %c2 = arith.constant 2 : index
    %c0_8 = arith.constant 0 : index
    %24 = vector.load %arg2[%c2, %c0_8] : memref<3x128xf32, #tpu.memory_space<vmem>>, vector<1x128xf32>
    %25 = vector.broadcast %24 : vector<1x128xf32> to vector<16x128xf32>
    %26 = arith.mulf %23, %25 : vector<16x128xf32>
    %27 = arith.addf %16, %26 : vector<16x128xf32>
    %c0_9 = arith.constant 0 : index
    %c0_10 = arith.constant 0 : index
    %28 = vector.load %arg3[%c0_9, %c0_10] : memref<128x128xf32, #tpu.memory_space<vmem>>, vector<128x128xf32>
    %cst_11 = arith.constant dense<0.000000e+00> : vector<16x128xf32>
    %29 = tpu.matmul %27, %28, %cst_11 {dimension_numbers = #tpu.dot_dimension_numbers<[1], [0], [0], [1], [0, 0, 1, 1], [], []>} : vector<16x128xf32>, vector<128x128xf32>, vector<16x128xf32> -> vector<16x128xf32>
    %c0_12 = arith.constant 0 : index
    %c0_13 = arith.constant 0 : index
    %30 = vector.load %arg4[%c0_12, %c0_13] : memref<1x128xf32, #tpu.memory_space<vmem>>, vector<1x128xf32>
    %31 = vector.broadcast %30 : vector<1x128xf32> to vector<16x128xf32>
    %32 = arith.addf %29, %31 : vector<16x128xf32>
    %c0_14 = arith.constant 0 : index
    %c0_15 = arith.constant 0 : index
    %c0_16 = arith.constant 0 : index
    %33 = vector.load %arg5[%c0_14, %c0_15, %c0_16] : memref<1x16x128xf32, #tpu.memory_space<vmem>>, vector<1x16x128xf32>
    %34 = vector.shape_cast %33 : vector<1x16x128xf32> to vector<16x128xf32>
    %35 = vector.shape_cast %32 : vector<16x128xf32> to vector<1x16x128xf32>
    tpu.vector_store %arg5[%c0_14, %c0_15, %c0_16], %35 {strides = array<i32>} : memref<1x16x128xf32, #tpu.memory_space<vmem>>, vector<1x16x128xf32>,
    return
  }
  func.func @transform_0(%arg0: i32) -> (i32, i32, i32) {
    %c0_i32 = arith.constant 0 : i32
    %c0_i32_0 = arith.constant 0 : i32
    %c0_i32_1 = arith.constant 0 : i32
    return %arg0, %c0_i32, %c0_i32_0 : i32, i32, i32
  }
  func.func @transform_1(%arg0: i32) -> (i32, i32) {
    %c0_i32 = arith.constant 0 : i32
    %c0_i32_0 = arith.constant 0 : i32
    %c0_i32_1 = arith.constant 0 : i32
    return %c0_i32, %c0_i32_0 : i32, i32
  }
  func.func @transform_2(%arg0: i32) -> (i32, i32) {
    %c0_i32 = arith.constant 0 : i32
    %c0_i32_0 = arith.constant 0 : i32
    %c0_i32_1 = arith.constant 0 : i32
    return %c0_i32, %c0_i32_0 : i32, i32
  }
  func.func @transform_3(%arg0: i32) -> (i32, i32) {
    %c0_i32 = arith.constant 0 : i32
    %c0_i32_0 = arith.constant 0 : i32
    %c0_i32_1 = arith.constant 0 : i32
    return %c0_i32, %c0_i32_0 : i32, i32
  }
  func.func @transform_4(%arg0: i32) -> (i32, i32, i32) {
    %c0_i32 = arith.constant 0 : i32
    %c0_i32_0 = arith.constant 0 : i32
    %c0_i32_1 = arith.constant 0 : i32
    return %arg0, %c0_i32, %c0_i32_0 : i32, i32, i32
  }
}

</mosaic_0001>

<llo_original>
// kernel: tpu_custom_call.1
$region0: #{tpu_custom_call.1}
  #allocation0 [shape = 'u32[]', space=smem, size = 0x4, offset = 0x4, fixed_abs, tag = 'smem constant byte address 0x4 - core index']
  #allocation1 [shape = 'u32[144,128]{1,0:T(1,128)}', space=vmem, size = 0x12000, scoped, tag = 'internal scratch']
  %s0 = inlined_call_operand.hbm [shape: f32[2,16,128], index: 0, kind: input, shape index: {}]
  %s1 = inlined_call_operand.hbm [shape: f32[3,128], index: 1, kind: input, shape index: {}]
  %s2 = inlined_call_operand.hbm [shape: f32[128,128], index: 2, kind: input, shape index: {}]
  %s3 = inlined_call_operand.vmem [shape: f32[1,128], index: 3, kind: input, shape index: {}]
  %s4 = inlined_call_operand.hbm [shape: f32[2,16,128], index: 4, kind: output, shape index: {}]
  %s5 = sld [smem:[#allocation0]]
  $region61: #{tpu_custom_call.1} parent=0
    _
  %s7 = ssub.s32 1, %s5
  %s8 = scalar_select 0, %s7, %s5
  $region1: #{tpu_custom_call.1} parent=0
    #allocation2 [shape = 'u8[16384]{0}', space=vmem, size = 0x4000, scoped, tag = 'input window, operand 0']
    #allocation3 [shape = 's32[2]{0}', space=sflag, size = 0x8, scoped, tag = 'scoped memory for tpu_custom_call.1']
    #allocation4 [shape = 's32[2]{0}', space=sflag, size = 0x8, scoped, tag = 'scoped memory for tpu_custom_call.1']
    #allocation5 [shape = 'u8[2048]{0}', space=vmem, size = 0x800, scoped, tag = 'input window, operand 1, single buffered']
    #allocation6 [shape = 's32[1]{0}', space=sflag, size = 0x4, scoped, tag = 'scoped memory for tpu_custom_call.1']
    #allocation7 [shape = 'u8[65536]{0}', space=vmem, size = 0x10000, scoped, tag = 'input window, operand 2, single buffered']
    #allocation8 [shape = 'u8[16384]{0}', space=vmem, size = 0x4000, scoped, tag = 'output window, operand 0']
    %9 = vsyncpa [#allocation3], 0
    %s10 = scalar_lea.sflag [#allocation3], 1
    %11 = vsyncpa %s10, 0
    %12 = vsyncpa [#allocation6], 0
    %13 = vsyncpa [#allocation4], 0
    %s14 = scalar_lea.sflag [#allocation4], 1
    %15 = vsyncpa %s14, 0
    loop: start=0, step=1, limit=4
    $region2: #{tpu_custom_call.1} parent=1 // loop_pre_header
      _
    $region3: #{tpu_custom_call.1} parent=1 // loop_header
      %s17 = sphi 0, %s21
      %p18 = scmp.ge.s32.totalorder %s17, 4
      %s27 = sphi 0, %s29
      %s30 = sphi 0, %s27
      %s31 = sphi 0, %s30
      %s47 = sphi 0, %s31
      %s51 = sphi 0, %s51
      %s53 = sphi 0, %s51
      %s54 = sphi 0, %s53
      %s68 = sphi 0, %s54
      %s72 = sphi 0, %s72
      %s74 = sphi 0, %s72
      %s75 = sphi 0, %s74
      %s89 = sphi 0, %s75
      %s93 = sphi 0, %s93
      %s95 = sphi 0, %s93
      %s96 = sphi 0, %s95
      %s110 = sphi 0, %s96
      %s116 = sphi 0, %s118
      %s119 = sphi 0, %s116
      %s120 = sphi 0, %s119
      %s136 = sphi 0, %s120
    $region4: #{tpu_custom_call.1} parent=1 // loop_header_branch
      %20 = sbr.rel (%p18) target = $region8
    $region5: #{tpu_custom_call.1} parent=1 // loop_body
      %s22 = ssub.s32 %s17, 1
      %s23 = ssub.s32 %s17, 2
      %s24 = sadd.s32 %s17, 1
      %s25 = ssub.s32 %s17, %s24
      %p26 = scmp.eq.s32.totalorder %s25, 0
      %s28 = sadd.s32 %s27, 1
      %s29 = scalar_select %p26, %s27, %s28
      %p32 = pneg %p26
      %p33 = scmp.eq.s32.totalorder %s17, 1
      %p34 = por %p32, %p33
      %p35 = scmp.ne.s32.totalorder %s27, %s30
      %p36 = scmp.eq.s32.totalorder %s17, 0
      %p37 = por %p35, %p36
      %p38 = scmp.ne.s32.totalorder %s27, %s30
      %p39 = scmp.eq.s32.totalorder %s22, 1
      %p40 = por %p38, %p39
      %p41 = scmp.ne.s32.totalorder %s30, %s31
      %p42 = scmp.eq.s32.totalorder %s22, 0
      %p43 = por %p41, %p42
      %p44 = scmp.ne.s32.totalorder %s30, %s31
      %p45 = scmp.eq.s32.totalorder %s23, 1
      %p46 = por %p44, %p45
      %p48 = scmp.ne.s32.totalorder %s31, %s47
      %p49 = scmp.eq.s32.totalorder %s23, 0
      %p50 = por %p48, %p49
      %s52 = sadd.s32 %s51, 1
      %p55 = scmp.eq.s32.totalorder %s17, 1
      %p56 = scmp.ne.s32.totalorder %s51, %s53
      %p57 = scmp.eq.s32.totalorder %s17, 0
      %p58 = por %p56, %p57
      %p59 = scmp.ne.s32.totalorder %s51, %s53
      %p60 = scmp.eq.s32.totalorder %s22, 1
      %p61 = por %p59, %p60
      %p62 = scmp.ne.s32.totalorder %s53, %s54
      %p63 = scmp.eq.s32.totalorder %s22, 0
      %p64 = por %p62, %p63
      %p65 = scmp.ne.s32.totalorder %s53, %s54
      %p66 = scmp.eq.s32.totalorder %s23, 1
      %p67 = por %p65, %p66
      %p69 = scmp.ne.s32.totalorder %s54, %s68
      %p70 = scmp.eq.s32.totalorder %s23, 0
      %p71 = por %p69, %p70
      %s73 = sadd.s32 %s72, 1
      %p76 = scmp.eq.s32.totalorder %s17, 1
      %p77 = scmp.ne.s32.totalorder %s72, %s74
      %p78 = scmp.eq.s32.totalorder %s17, 0
      %p79 = por %p77, %p78
      %p80 = scmp.ne.s32.totalorder %s72, %s74
      %p81 = scmp.eq.s32.totalorder %s22, 1
      %p82 = por %p80, %p81
      %p83 = scmp.ne.s32.totalorder %s74, %s75
      %p84 = scmp.eq.s32.totalorder %s22, 0
      %p85 = por %p83, %p84
      %p86 = scmp.ne.s32.totalorder %s74, %s75
      %p87 = scmp.eq.s32.totalorder %s23, 1
      %p88 = por %p86, %p87
      %p90 = scmp.ne.s32.totalorder %s75, %s89
      %p91 = scmp.eq.s32.totalorder %s23, 0
      %p92 = por %p90, %p91
      %s94 = sadd.s32 %s93, 1
      %p97 = scmp.eq.s32.totalorder %s17, 1
      %p98 = scmp.ne.s32.totalorder %s93, %s95
      %p99 = scmp.eq.s32.totalorder %s17, 0
      %p100 = por %p98, %p99
      %p101 = scmp.ne.s32.totalorder %s93, %s95
      %p102 = scmp.eq.s32.totalorder %s22, 1
      %p103 = por %p101, %p102
      %p104 = scmp.ne.s32.totalorder %s95, %s96
      %p105 = scmp.eq.s32.totalorder %s22, 0
      %p106 = por %p104, %p105
      %p107 = scmp.ne.s32.totalorder %s95, %s96
      %p108 = scmp.eq.s32.totalorder %s23, 1
      %p109 = por %p107, %p108
      %p111 = scmp.ne.s32.totalorder %s96, %s110
      %p112 = scmp.eq.s32.totalorder %s23, 0
      %p113 = por %p111, %p112
      %s114 = ssub.s32 %s17, %s24
      %p115 = scmp.eq.s32.totalorder %s114, 0
      %s117 = sadd.s32 %s116, 1
      %s118 = scalar_select %p115, %s116, %s117
      %p121 = pneg %p115
      %p122 = scmp.eq.s32.totalorder %s17, 1
      %p123 = por %p121, %p122
      %p124 = scmp.ne.s32.totalorder %s116, %s119
      %p125 = scmp.eq.s32.totalorder %s17, 0
      %p126 = por %p124, %p125
      %p127 = scmp.ne.s32.totalorder %s116, %s119
      %p128 = scmp.eq.s32.totalorder %s22, 1
      %p129 = por %p127, %p128
      %p130 = scmp.ne.s32.totalorder %s119, %s120
      %p131 = scmp.eq.s32.totalorder %s22, 0
      %p132 = por %p130, %p131
      %p133 = scmp.ne.s32.totalorder %s119, %s120
      %p134 = scmp.eq.s32.totalorder %s23, 1
      %p135 = por %p133, %p134
      %p137 = scmp.ne.s32.totalorder %s120, %s136
      %p138 = scmp.eq.s32.totalorder %s23, 0
      %p139 = por %p137, %p138
      %p140 = scmp.le.s32.totalorder 1, %s17
      %p141 = scmp.lt.s32.totalorder %s17, 3
      %p142 = pnand %p140, %p141
      %p143 = pneg %p142
      // Predicated region
      $region9: #{tpu_custom_call.1} parent=5 // pred_check
        _
      $region10: #{tpu_custom_call.1} parent=5 // pred_check_branch
        %145 = sbr.rel (%p142) target = $region12
      $region11: #{tpu_custom_call.1} parent=5 // pred_region
        %s146 = ssub.s32 %s17, 1
        // Predicated region
        $region13: #{tpu_custom_call.1} parent=11 // pred_check
          %p147 = pneg %p64
        $region14: #{tpu_custom_call.1} parent=11 // pred_check_branch
          %149 = sbr.rel (%p147) target = $region16
        $region15: #{tpu_custom_call.1} parent=11 // pred_region
          %s151 = ssub.s32 64, 64
          %152 = vsyncadd [#allocation6], %s151
          %s154 = sshll.u32 [#allocation5], 4
          %s155 = int_to_ptr.vmem [resolvable:$true] %s154
          %157 = dma.hbm_to_vmem [thread:$0]  %s1, 64, %s155, [#allocation6]
        $region16: #{tpu_custom_call.1} parent=11 // pred_fallthru
          _
        // Predicated region
        $region17: #{tpu_custom_call.1} parent=11 // pred_check
          %p158 = pneg %p85
        $region18: #{tpu_custom_call.1} parent=11 // pred_check_branch
          %160 = sbr.rel (%p158) target = $region20
        $region19: #{tpu_custom_call.1} parent=11 // pred_region
          %s162 = ssub.s32 2048, 2048
          %163 = vsyncadd [#allocation6], %s162
          %s164 = sshll.u32 [#allocation7], 4
          %s165 = int_to_ptr.vmem [resolvable:$true] %s164
          %170 = dma.hbm_to_vmem [thread:$0]  %s2, 2048, %s165, [#allocation6], 128, 128, 8
        $region20: #{tpu_custom_call.1} parent=11 // pred_fallthru
          _
        // Predicated region
        $region21: #{tpu_custom_call.1} parent=11 // pred_check
          %p171 = pneg %p106
        $region22: #{tpu_custom_call.1} parent=11 // pred_check_branch
          %173 = sbr.rel (%p171) target = $region24
        $region23: #{tpu_custom_call.1} parent=11 // pred_region
          _
        $region24: #{tpu_custom_call.1} parent=11 // pred_fallthru
          _
      $region12: #{tpu_custom_call.1} parent=5 // pred_fallthru
        _
      %p174 = scmp.lt.s32.totalorder %s17, 2
      // Predicated region
      $region25: #{tpu_custom_call.1} parent=5 // pred_check
        %p175 = pneg %p174
      $region26: #{tpu_custom_call.1} parent=5 // pred_check_branch
        %177 = sbr.rel (%p175) target = $region28
      $region27: #{tpu_custom_call.1} parent=5 // pred_region
        // Predicated region
        $region29: #{tpu_custom_call.1} parent=27 // pred_check
          %p178 = pneg %p37
        $region30: #{tpu_custom_call.1} parent=27 // pred_check_branch
          %180 = sbr.rel (%p178) target = $region32
        $region31: #{tpu_custom_call.1} parent=27 // pred_region
          %s181 = sand.u32 %s27, 1
          %s182 = scalar_lea.sflag [#allocation3], %s181
          %s183 = sand.u32 %s27, 1
          %s184 = smul.addr %s183, 16
          %s185 = scalar_lea.vmem [#allocation2], %s184
          %s187 = ssub.s32 256, 256
          %188 = vsyncadd %s182, %s187
          %s189 = smul.addr %s17, 2
          %s190 = smul.addr %s189, 128
          %s191 = scalar_lea.hbm %s0, %s190
          %s192 = sshll.u32 %s185, 4
          %s193 = int_to_ptr.vmem [resolvable:$true] %s192
          %198 = dma.hbm_to_vmem [thread:$0]  %s191, 256, %s193, %s182, 128, 128, 8
        $region32: #{tpu_custom_call.1} parent=27 // pred_fallthru
          _
      $region28: #{tpu_custom_call.1} parent=5 // pred_fallthru
        _
      %p199 = scmp.le.s32.totalorder 1, %s17
      %p200 = scmp.lt.s32.totalorder %s17, 3
      %p201 = pnand %p199, %p200
      %p202 = pneg %p201
      // Predicated region
      $region33: #{tpu_custom_call.1} parent=5 // pred_check
        _
      $region34: #{tpu_custom_call.1} parent=5 // pred_check_branch
        %204 = sbr.rel (%p201) target = $region36
      $region35: #{tpu_custom_call.1} parent=5 // pred_region
        %s205 = ssub.s32 %s17, 1
        %s206 = sand.u32 %s30, 1
        %s207 = scalar_lea.sflag [#allocation3], %s206
        %s208 = sand.u32 %s30, 1
        %s209 = smul.addr %s208, 16
        %s210 = scalar_lea.vmem [#allocation2], %s209
        // Predicated region
        $region37: #{tpu_custom_call.1} parent=35 // pred_check
          %p211 = pneg %p43
        $region38: #{tpu_custom_call.1} parent=35 // pred_check_branch
          %213 = sbr.rel (%p211) target = $region40
        $region39: #{tpu_custom_call.1} parent=35 // pred_region
          %214 = dma.done %s207, 256
        $region40: #{tpu_custom_call.1} parent=35 // pred_fallthru
          _
        // Predicated region
        $region41: #{tpu_custom_call.1} parent=35 // pred_check
          %p215 = pneg %p64
        $region42: #{tpu_custom_call.1} parent=35 // pred_check_branch
          %217 = sbr.rel (%p215) target = $region44
        $region43: #{tpu_custom_call.1} parent=35 // pred_region
          %218 = dma.done [#allocation6], 64
        $region44: #{tpu_custom_call.1} parent=35 // pred_fallthru
          _
        // Predicated region
        $region45: #{tpu_custom_call.1} parent=35 // pred_check
          %p219 = pneg %p85
        $region46: #{tpu_custom_call.1} parent=35 // pred_check_branch
          %221 = sbr.rel (%p219) target = $region48
        $region47: #{tpu_custom_call.1} parent=35 // pred_region
          %222 = dma.done [#allocation6], 2048
        $region48: #{tpu_custom_call.1} parent=35 // pred_fallthru
          _
        %s223 = sand.u32 %s30, 1
        %s224 = scalar_lea.sflag [#allocation3], %s223
        %s225 = sand.u32 %s30, 1
        %s226 = smul.addr %s225, 16
        %s227 = scalar_lea.vmem [#allocation2], %s226
        %p228 = pneg %p43
        %p229 = pneg %p40
        %p230 = pneg %p64
        %p231 = pneg %p61
        %p232 = pneg %p85
        %p233 = pneg %p82
        %p234 = pneg %p106
        %p235 = pneg %p103
        %p236 = pneg %p132
        %p237 = pneg %p129
        %s238 = sand.u32 %s119, 1
        %s239 = scalar_lea.sflag [#allocation4], %s238
        %s240 = sand.u32 %s119, 1
        %s241 = smul.addr %s240, 16
        %s242 = scalar_lea.vmem [#allocation8], %s241
        %v243 = vld [vmem:[%s210] sm:$0xff]
        %v244 = vld [vmem:[%s210 + $0x8] sm:$0xff]
        %v245 = vlaneseq
        %v246 = vshrl.u32 %v245, 7
        %v247 = vadd.s32 %v246, 8
        %v248 = vld [vmem:[#allocation5 + $0x1] sm:$0x1]
        %v249 = vlaneseq
        %v250 = vshrl.u32 %v249, 7
        %v251 = vsub.s32 0, %v250
        %v252 = vrot.slane %v248, %v251
        %v253 = vmul.f32 %v243, %v252
        %v254 = vmul.f32 %v244, %v252
        %v255 = vrot.slane %v243, 7
        %v256 = vrot.slane %v244, 7
        %vm257 = vcmp.lt.s32.totalorder %v246, 1
        %v258 = vsel %vm257, %v255, %v256
        %v259 = vsel %vm257, %v256, %v255
        %vm260 = vcmp.ge.s32.totalorder %v246, 1
        %vm261 = vcmp.ge.s32.totalorder %v247, 1
        %v262 = vsel %vm260, 1, 0
        %v263 = vsel %vm261, 1, 0
        %vm264 = vcmp.eq.s32.totalorder %v262, 1
        %vm265 = vcmp.eq.s32.totalorder %v263, 1
        %v266 = vsel %vm264, %v259, 0.0
        %v267 = vsel %vm265, %v258, 0.0
        %v268 = vld [vmem:[#allocation5] sm:$0x1]
        %v269 = vlaneseq
        %v270 = vshrl.u32 %v269, 7
        %v271 = vsub.s32 0, %v270
        %v272 = vrot.slane %v268, %v271
        %v273 = vmul.f32 %v266, %v272
        %v274 = vmul.f32 %v267, %v272
        %v275 = vadd.f32 %v253, %v273
        %v276 = vadd.f32 %v254, %v274
        %v277 = vrot.slane %v243, 1
        %v278 = vrot.slane %v244, 1
        %vm279 = vcmp.lt.s32.totalorder %v246, 7
        %v280 = vsel %vm279, %v277, %v278
        %v281 = vsel %vm279, %v278, %v277
        %vm282 = vcmp.lt.s32.totalorder %v246, 15
        %vm283 = vcmp.lt.s32.totalorder %v247, 15
        %v284 = vsel %vm282, 1, 0
        %v285 = vsel %vm283, 1, 0
        %vm286 = vcmp.eq.s32.totalorder %v284, 1
        %vm287 = vcmp.eq.s32.totalorder %v285, 1
        %v288 = vsel %vm286, %v280, 0.0
        %v289 = vsel %vm287, %v281, 0.0
        %v290 = vld [vmem:[#allocation5 + $0x2] sm:$0x1]
        %v291 = vlaneseq
        %v292 = vshrl.u32 %v291, 7
        %v293 = vsub.s32 0, %v292
        %v294 = vrot.slane %v290, %v293
        %v295 = vmul.f32 %v288, %v294
        %v296 = vmul.f32 %v289, %v294
        %v297 = vadd.f32 %v275, %v295
        %v298 = vadd.f32 %v276, %v296
        %v299 = vld [vmem:[#allocation7] sm:$0xff]
        %v300 = vld [vmem:[#allocation7 + $0x8] sm:$0xff]
        %v301 = vld [vmem:[#allocation7 + $0x10] sm:$0xff]
        %v302 = vld [vmem:[#allocation7 + $0x18] sm:$0xff]
        %v303 = vld [vmem:[#allocation7 + $0x20] sm:$0xff]
        %v304 = vld [vmem:[#allocation7 + $0x28] sm:$0xff]
        %v305 = vld [vmem:[#allocation7 + $0x30] sm:$0xff]
        %v306 = vld [vmem:[#allocation7 + $0x38] sm:$0xff]
        %v307 = vld [vmem:[#allocation7 + $0x40] sm:$0xff]
        %v308 = vld [vmem:[#allocation7 + $0x48] sm:$0xff]
        %v309 = vld [vmem:[#allocation7 + $0x50] sm:$0xff]
        %v310 = vld [vmem:[#allocation7 + $0x58] sm:$0xff]
        %v311 = vld [vmem:[#allocation7 + $0x60] sm:$0xff]
        %v312 = vld [vmem:[#allocation7 + $0x68] sm:$0xff]
        %v313 = vld [vmem:[#allocation7 + $0x70] sm:$0xff]
        %v314 = vld [vmem:[#allocation7 + $0x78] sm:$0xff]
        %v315 = vld [vmem:[%s3] sm:$0x1]
        %v317 = vlaneseq
        %v318 = vshrl.u32 %v317, 7
        %v319 = vsub.s32 0, %v318
        %v320 = vrot.slane %v315, %v319
        %322 = vmatprep.subr.mxu0 0.0
        %323 = vmatpush1.msra.mxu0 %v299
        %324 = vmatprep.subr.mxu0 0.0
        %325 = vmatpush1.msra.mxu0 %v300
        %326 = vmatprep.subr.mxu0 0.0
        %327 = vmatpush1.msra.mxu0 %v301
        %328 = vmatprep.subr.mxu0 0.0
        %329 = vmatpush1.msra.mxu0 %v302
        %330 = vmatprep.subr.mxu0 0.0
        %331 = vmatpush1.msra.mxu0 %v303
        %332 = vmatprep.subr.mxu0 0.0
        %333 = vmatpush1.msra.mxu0 %v304
        %334 = vmatprep.subr.mxu0 0.0
        %335 = vmatpush1.msra.mxu0 %v305
        %336 = vmatprep.subr.mxu0 0.0
        %337 = vmatpush1.msra.mxu0 %v306
        %338 = vmatprep.subr.mxu0 0.0
        %339 = vmatpush1.msra.mxu0 %v307
        %340 = vmatprep.subr.mxu0 0.0
        %341 = vmatpush1.msra.mxu0 %v308
        %342 = vmatprep.subr.mxu0 0.0
        %343 = vmatpush1.msra.mxu0 %v309
        %344 = vmatprep.subr.mxu0 0.0
        %345 = vmatpush1.msra.mxu0 %v310
        %346 = vmatprep.subr.mxu0 0.0
        %347 = vmatpush1.msra.mxu0 %v311
        %348 = vmatprep.subr.mxu0 0.0
        %349 = vmatpush1.msra.mxu0 %v312
        %350 = vmatprep.subr.mxu0 0.0
        %351 = vmatpush1.msra.mxu0 %v313
        %352 = vmatprep.subr.mxu0 0.0
        %353 = vmatpush1.msra.mxu0 %v314
        %354 = vmatprep.subr.mxu0 0.0
        %355 = vmatpush1.msra.mxu0 0.0
        %356 = vmatprep.subr.mxu0 0.0
        %357 = vmatpush1.msra.mxu0 0.0
        %358 = vmatprep.subr.mxu0 0.0
        %359 = vmatpush1.msra.mxu0 0.0
        %360 = vmatprep.subr.mxu0 0.0
        %361 = vmatpush1.msra.mxu0 0.0
        %362 = vmatprep.subr.mxu0 0.0
        %363 = vmatpush1.msra.mxu0 0.0
        %364 = vmatprep.subr.mxu0 0.0
        %365 = vmatpush1.msra.mxu0 0.0
        %366 = vmatprep.subr.mxu0 0.0
        %367 = vmatpush1.msra.mxu0 0.0
        %368 = vmatprep.subr.mxu0 0.0
        %369 = vmatpush1.msra.mxu0 0.0
        %370 = vmatprep.subr.mxu0 0.0
        %371 = vmatpush1.msra.mxu0 0.0
        %372 = vmatprep.subr.mxu0 0.0
        %373 = vmatpush1.msra.mxu0 0.0
        %374 = vmatprep.subr.mxu0 0.0
        %375 = vmatpush1.msra.mxu0 0.0
        %376 = vmatprep.subr.mxu0 0.0
        %377 = vmatpush1.msra.mxu0 0.0
        %378 = vmatprep.subr.mxu0 0.0
        %379 = vmatpush1.msra.mxu0 0.0
        %380 = vmatprep.subr.mxu0 0.0
        %381 = vmatpush1.msra.mxu0 0.0
        %382 = vmatprep.subr.mxu0 0.0
        %383 = vmatpush1.msra.mxu0 0.0
        %384 = vmatprep.subr.mxu0 0.0
        %385 = vmatpush1.msra.mxu0 0.0
        %386 = vmatprep.mubr.f32.mxu0 0.0
        %387 = vmatmul.mubr.f32.gmra.mrb[0].mxu0 %v297
        %v388 = vpop.f32.mrb[0].mxu0
        %v389 = vadd.f32 %v320, %v388
        %v390 = vpop.f32.mrb[0].mxu0
        %391 = vmatprep.mubr.f32.mxu0 0.0
        %392 = vmatmul.mubr.f32.gmra.mrb[0].mxu0 %v298
        %v393 = vpop.f32.mrb[0].mxu0
        %v394 = vadd.f32 %v320, %v393
        %v395 = vpop.f32.mrb[0].mxu0
        %396 = vdwg.mxu0
        %397 = vst [vmem:[%s242] sm:$0xff] %v389
        %398 = vst [vmem:[%s242 + $0x8] sm:$0xff] %v394
        %s399 = sand.u32 %s119, 1
        %s400 = scalar_lea.sflag [#allocation4], %s399
        %s401 = sand.u32 %s119, 1
        %s402 = smul.addr %s401, 16
        %s403 = scalar_lea.vmem [#allocation8], %s402
        // Predicated region
        $region49: #{tpu_custom_call.1} parent=35 // pred_check
          %p404 = pneg %p129
        $region50: #{tpu_custom_call.1} parent=35 // pred_check_branch
          %406 = sbr.rel (%p404) target = $region52
        $region51: #{tpu_custom_call.1} parent=35 // pred_region
          %s408 = ssub.s32 256, 256
          %409 = vsyncadd %s400, %s408
          %s410 = smul.addr %s22, 2
          %s411 = smul.addr %s410, 128
          %s412 = scalar_lea.hbm %s4, %s411
          %s413 = sshll.u32 %s403, 4
          %s414 = int_to_ptr.vmem [resolvable:$true] %s413
          %419 = dma.vmem_to_hbm [thread:$0]  %s414, 256, %s412, %s400, 128, 128, 8
        $region52: #{tpu_custom_call.1} parent=35 // pred_fallthru
          _
      $region36: #{tpu_custom_call.1} parent=5 // pred_fallthru
        _
      %p420 = scmp.le.s32.totalorder 2, %s17
      // Predicated region
      $region53: #{tpu_custom_call.1} parent=5 // pred_check
        %p421 = pneg %p420
      $region54: #{tpu_custom_call.1} parent=5 // pred_check_branch
        %423 = sbr.rel (%p421) target = $region56
      $region55: #{tpu_custom_call.1} parent=5 // pred_region
        %s424 = ssub.s32 %s17, 2
        // Predicated region
        $region57: #{tpu_custom_call.1} parent=55 // pred_check
          %p425 = pneg %p135
        $region58: #{tpu_custom_call.1} parent=55 // pred_check_branch
          %427 = sbr.rel (%p425) target = $region60
        $region59: #{tpu_custom_call.1} parent=55 // pred_region
          %s428 = sand.u32 %s120, 1
          %s429 = scalar_lea.sflag [#allocation4], %s428
          %s430 = sand.u32 %s120, 1
          %s431 = smul.addr %s430, 16
          %s432 = scalar_lea.vmem [#allocation8], %s431
          %433 = dma.done %s429, 256
        $region60: #{tpu_custom_call.1} parent=55 // pred_fallthru
          _
      $region56: #{tpu_custom_call.1} parent=5 // pred_fallthru
        _
    $region6: #{tpu_custom_call.1} parent=1 // loop_footer
      %s21 = sadd.s32 1, %s17
    $region7: #{tpu_custom_call.1} parent=1 // loop_footer_branch
      %16 = sbr.rel target = $region3
    $region8: #{tpu_custom_call.1} parent=1 // loop_exit
      _
    %434 = vsyncpa [#allocation3], 1
    %s435 = scalar_lea.sflag [#allocation3], 1
    %436 = vsyncpa %s435, 1
    %437 = vsyncpa [#allocation6], 1
    %438 = vsyncpa [#allocation4], 1
    %s439 = scalar_lea.sflag [#allocation4], 1
    %440 = vsyncpa %s439, 1

</llo_original>
